<compile_context>
chip_gen: v6e
topology: v6e:2x2x1
jax: 0.10.0
libtpu: 0.0.40
codegen_flags: <defaults>
</compile_context>

<pallas_src>
import functools

import jax
import jax.numpy as jnp
from jax.experimental import pallas as pl
from jax.experimental.pallas import tpu as pltpu


def _ublock_kernel(x_ref, w1_ref, b1_ref, w2_ref, b2_ref, o_ref,
                   p1_ref, h1_ref, p2_ref, *, cin, cout, h, w, compute_dtype):
    """Fused UBlock for one batch element.

    x_ref : (1, Cin, H*W)        input image, flattened spatial on lanes
    w1_ref: (Cout, 9*Cin)        conv1 weights, tap-major im2col layout (compute dtype)
    b1_ref: (Cout, 1)            conv1 bias (f32)
    w2_ref: (Cout, 9*Cout)       conv2 weights (compute dtype)
    b2_ref: (Cout, 1)            conv2 bias (f32)
    o_ref : (1, Cout, H*W)       full-frame output (valid region cropped by the wrapper)
    p1_ref: (9*Cin, H*W)  f32    VMEM scratch: conv1 im2col slab
    h1_ref: (Cout, H*W)   f32    VMEM scratch: relu(conv1) intermediate (never hits HBM)
    p2_ref: (9*Cout, H*W) f32    VMEM scratch: conv2 im2col slab
    """
    hw = h * w
    shifts = [ki * w + kj for ki in range(3) for kj in range(3)]

    # Zero the slabs so the (cropped-away) wrapped tail lanes are deterministic.
    p1_ref[...] = jnp.zeros_like(p1_ref)
    p2_ref[...] = jnp.zeros_like(p2_ref)

    # ---- conv1: build im2col slab (9*Cin, H*W); single K = 9*Cin MXU matmul ----
    # Row-block t holds the input shifted left by s = ki*W + kj, so column p of the
    # matmul result is the valid conv output at pixel (p // W, p % W).
    for t, s in enumerate(shifts):
        p1_ref[t * cin:(t + 1) * cin, 0:hw - s] = x_ref[0, :, s:hw]
    acc1 = jnp.dot(w1_ref[...], p1_ref[...].astype(compute_dtype),
                   preferred_element_type=jnp.float32)            # (Cout, H*W), f32 acc
    h1_ref[...] = jnp.maximum(acc1 + b1_ref[...], 0.0)            # bias + ReLU, stays in VMEM

    # ---- conv2: same trick on the intermediate ----
    for t, s in enumerate(shifts):
        p2_ref[t * cout:(t + 1) * cout, 0:hw - s] = h1_ref[:, s:hw]
    acc2 = jnp.dot(w2_ref[...], p2_ref[...].astype(compute_dtype),
                   preferred_element_type=jnp.float32)            # (Cout, H*W), f32 acc
    o_ref[0] = (acc2 + b2_ref[...]).astype(o_ref.dtype)


def ublock_forward(x_nchw, params, *, compute_dtype=jnp.bfloat16):
    """UBlock forward: conv2(relu(conv1(x))). Input/output NCHW like PyTorch."""
    w1, b1, w2, b2 = params                       # PyTorch layouts: (O,I,3,3), (O,), ...
    n, cin, h, w = x_nchw.shape
    cout = w1.shape[0]
    ho, wo = h - 4, w - 4                         # two 3x3 valid convs
    hw = h * w

    # Free reshape: (H, W) are contiguous in NCHW.
    x_flat = x_nchw.reshape(n, cin, hw)

    # Weights OIHW -> (O, kh*kw*I), tap-major to match the im2col slab row order.
    # (Tiny one-time prep; in a real model these would be stored pre-flattened.)
    w1_flat = jnp.transpose(w1, (0, 2, 3, 1)).reshape(cout, 9 * cin).astype(compute_dtype)
    w2_flat = jnp.transpose(w2, (0, 2, 3, 1)).reshape(cout, 9 * cout).astype(compute_dtype)
    b1_col = b1.astype(jnp.float32).reshape(cout, 1)
    b2_col = b2.astype(jnp.float32).reshape(cout, 1)

    kernel = functools.partial(_ublock_kernel, cin=cin, cout=cout, h=h, w=w,
                               compute_dtype=compute_dtype)

    out_flat = pl.pallas_call(
        kernel,
        out_shape=jax.ShapeDtypeStruct((n, cout, hw), jnp.float32),
        grid=(n,),
        in_specs=[
            pl.BlockSpec((1, cin, hw), lambda i: (i, 0, 0)),
            pl.BlockSpec((cout, 9 * cin), lambda i: (0, 0)),
            pl.BlockSpec((cout, 1), lambda i: (0, 0)),
            pl.BlockSpec((cout, 9 * cout), lambda i: (0, 0)),
            pl.BlockSpec((cout, 1), lambda i: (0, 0)),
        ],
        out_specs=pl.BlockSpec((1, cout, hw), lambda i: (i, 0, 0)),
        scratch_shapes=[
            pltpu.VMEM((9 * cin, hw), jnp.float32),   # conv1 im2col slab
            pltpu.VMEM((cout, hw), jnp.float32),      # relu(conv1) intermediate
            pltpu.VMEM((9 * cout, hw), jnp.float32),  # conv2 im2col slab
        ],
        compiler_params=pltpu.CompilerParams(dimension_semantics=("parallel",)),
    )(x_flat, w1_flat, b1_col, w2_flat, b2_col)

    # Full-frame flat output -> (N, Cout, H, W) is a free reshape; crop to valid region.
    return out_flat.reshape(n, cout, h, w)[:, :, :ho, :wo]


def init_params(key, in_channels, out_channels):
    """Deterministic init mimicking PyTorch Conv2d default (uniform +-1/sqrt(fan_in))."""
    k1, k2, k3, k4 = jax.random.split(key, 4)
    bound1 = 1.0 / jnp.sqrt(in_channels * 9)
    bound2 = 1.0 / jnp.sqrt(out_channels * 9)
    w1 = jax.random.uniform(k1, (out_channels, in_channels, 3, 3), jnp.float32, -bound1, bound1)
    b1 = jax.random.uniform(k2, (out_channels,), jnp.float32, -bound1, bound1)
    w2 = jax.random.uniform(k3, (out_channels, out_channels, 3, 3), jnp.float32, -bound2, bound2)
    b2 = jax.random.uniform(k4, (out_channels,), jnp.float32, -bound2, bound2)
    return w1, b1, w2, b2


def _reference(x_nchw, params, compute_dtype=jnp.float32):
    """Plain-JAX reference (NCHW, torch.nn.Conv2d semantics), f32 accumulation."""
    w1, b1, w2, b2 = params

    def conv(x, wgt, b):
        y = jax.lax.conv_general_dilated(
            x.astype(compute_dtype), wgt.astype(compute_dtype),
            window_strides=(1, 1), padding="VALID",
            dimension_numbers=("NCHW", "OIHW", "NCHW"),
            preferred_element_type=jnp.float32)
        return y + b.astype(jnp.float32)[None, :, None, None]

    h = jax.nn.relu(conv(x_nchw, w1, b1))
    return conv(h, w2, b2)


if __name__ == "__main__":
    key = jax.random.PRNGKey(0)
    k_x, k_p = jax.random.split(key)

    batch, in_ch, out_ch, spatial = 2, 4, 8, 16
    x = jax.random.normal(k_x, (batch, in_ch, spatial, spatial), jnp.float32)
    params = init_params(k_p, in_ch, out_ch)

    # Fast path: bf16 MXU operands, f32 accumulation. Compare against a reference that
    # quantizes operands the same way (differences are then only f32 summation order).
    out_bf16 = jax.block_until_ready(ublock_forward(x, params, compute_dtype=jnp.bfloat16))
    assert out_bf16.shape == (batch, out_ch, spatial - 4, spatial - 4), out_bf16.shape
    ref_bf16 = jax.block_until_ready(_reference(x, params, compute_dtype=jnp.bfloat16))
    assert jnp.allclose(out_bf16, ref_bf16, atol=1e-2, rtol=1e-2), "bf16 path mismatch"

    # Structural exactness check at f32 compute (matches PyTorch f32 semantics).
    out_f32 = jax.block_until_ready(ublock_forward(x, params, compute_dtype=jnp.float32))
    ref_f32 = jax.block_until_ready(_reference(x, params, compute_dtype=jnp.float32))
    assert jnp.allclose(out_f32, ref_f32, atol=1e-4, rtol=1e-4), "f32 path mismatch"

    print("KERNEL_OK")
</pallas_src>

<mosaic_0001>
module attributes {stable_mosaic.version = 11 : i64} {
  func.func @_ublock_kernel(%arg0: i32, %arg1: memref<1x4x256xf32, #tpu.memory_space<vmem>>, %arg2: memref<8x36xbf16, #tpu.memory_space<vmem>>, %arg3: memref<8x1xf32, #tpu.memory_space<vmem>>, %arg4: memref<8x72xbf16, #tpu.memory_space<vmem>>, %arg5: memref<8x1xf32, #tpu.memory_space<vmem>>, %arg6: memref<1x8x256xf32, #tpu.memory_space<vmem>>, %arg7: memref<36x256xf32, #tpu.memory_space<vmem>>, %arg8: memref<8x256xf32, #tpu.memory_space<vmem>>, %arg9: memref<72x256xf32, #tpu.memory_space<vmem>>) attributes {dimension_semantics = [#tpu.dimension_semantics<parallel>], iteration_bounds = array<i64: 2>, scalar_prefetch = 0 : i64, scratch_operands = 3 : i64, tpu.core_type = #tpu.core_type<tc>, window_params = [{transform_indices = @transform_0, window_bounds = array<i64: 1, 4, 256>}, {pipeline_mode = #tpu.pipeline_mode<synchronous>, transform_indices = @transform_1, window_bounds = array<i64: 8, 36>}, {pipeline_mode = #tpu.pipeline_mode<synchronous>, transform_indices = @transform_2, window_bounds = array<i64: 8, 1>}, {pipeline_mode = #tpu.pipeline_mode<synchronous>, transform_indices = @transform_3, window_bounds = array<i64: 8, 72>}, {pipeline_mode = #tpu.pipeline_mode<synchronous>, transform_indices = @transform_4, window_bounds = array<i64: 8, 1>}, {transform_indices = @transform_5, window_bounds = array<i64: 1, 8, 256>}]} {
    %cst = arith.constant 0.000000e+00 : f32
    %0 = vector.broadcast %cst : f32 to vector<36x256xf32>
    %c0 = arith.constant 0 : index
    %c0_0 = arith.constant 0 : index
    %1 = vector.load %arg7[%c0, %c0_0] : memref<36x256xf32, #tpu.memory_space<vmem>>, vector<36x256xf32>
    tpu.vector_store %arg7[%c0, %c0_0], %0 {strides = array<i32>} : memref<36x256xf32, #tpu.memory_space<vmem>>, vector<36x256xf32>,
    %cst_1 = arith.constant 0.000000e+00 : f32
    %2 = vector.broadcast %cst_1 : f32 to vector<72x256xf32>
    %c0_2 = arith.constant 0 : index
    %c0_3 = arith.constant 0 : index
    %3 = vector.load %arg9[%c0_2, %c0_3] : memref<72x256xf32, #tpu.memory_space<vmem>>, vector<72x256xf32>
    tpu.vector_store %arg9[%c0_2, %c0_3], %2 {strides = array<i32>} : memref<72x256xf32, #tpu.memory_space<vmem>>, vector<72x256xf32>,
    %c0_4 = arith.constant 0 : index
    %c0_5 = arith.constant 0 : index
    %c0_6 = arith.constant 0 : index
    %4 = vector.load %arg1[%c0_4, %c0_5, %c0_6] : memref<1x4x256xf32, #tpu.memory_space<vmem>>, vector<1x4x256xf32>
    %5 = vector.shape_cast %4 : vector<1x4x256xf32> to vector<4x256xf32>
    %c0_7 = arith.constant 0 : index
    %c0_8 = arith.constant 0 : index
    %6 = vector.load %arg7[%c0_7, %c0_8] : memref<36x256xf32, #tpu.memory_space<vmem>>, vector<4x256xf32>
    tpu.vector_store %arg7[%c0_7, %c0_8], %5 {strides = array<i32>} : memref<36x256xf32, #tpu.memory_space<vmem>>, vector<4x256xf32>,
    %c0_9 = arith.constant 0 : index
    %c0_10 = arith.constant 0 : index
    %c1 = arith.constant 1 : index
    %7 = vector.load %arg1[%c0_9, %c0_10, %c1] : memref<1x4x256xf32, #tpu.memory_space<vmem>>, vector<1x4x255xf32>
    %8 = vector.shape_cast %7 : vector<1x4x255xf32> to vector<4x255xf32>
    %c4 = arith.constant 4 : index
    %c0_11 = arith.constant 0 : index
    %9 = vector.load %arg7[%c4, %c0_11] : memref<36x256xf32, #tpu.memory_space<vmem>>, vector<4x255xf32>
    tpu.vector_store %arg7[%c4, %c0_11], %8 {strides = array<i32>} : memref<36x256xf32, #tpu.memory_space<vmem>>, vector<4x255xf32>,
    %c0_12 = arith.constant 0 : index
    %c0_13 = arith.constant 0 : index
    %c2 = arith.constant 2 : index
    %10 = vector.load %arg1[%c0_12, %c0_13, %c2] : memref<1x4x256xf32, #tpu.memory_space<vmem>>, vector<1x4x254xf32>
    %11 = vector.shape_cast %10 : vector<1x4x254xf32> to vector<4x254xf32>
    %c8 = arith.constant 8 : index
    %c0_14 = arith.constant 0 : index
    %12 = vector.load %arg7[%c8, %c0_14] : memref<36x256xf32, #tpu.memory_space<vmem>>, vector<4x254xf32>
    tpu.vector_store %arg7[%c8, %c0_14], %11 {strides = array<i32>} : memref<36x256xf32, #tpu.memory_space<vmem>>, vector<4x254xf32>,
    %c0_15 = arith.constant 0 : index
    %c0_16 = arith.constant 0 : index
    %c16 = arith.constant 16 : index
    %13 = vector.load %arg1[%c0_15, %c0_16, %c16] : memref<1x4x256xf32, #tpu.memory_space<vmem>>, vector<1x4x240xf32>
    %14 = vector.shape_cast %13 : vector<1x4x240xf32> to vector<4x240xf32>
    %c12 = arith.constant 12 : index
    %c0_17 = arith.constant 0 : index
    %15 = vector.load %arg7[%c12, %c0_17] : memref<36x256xf32, #tpu.memory_space<vmem>>, vector<4x240xf32>
    tpu.vector_store %arg7[%c12, %c0_17], %14 {strides = array<i32>} : memref<36x256xf32, #tpu.memory_space<vmem>>, vector<4x240xf32>,
    %c0_18 = arith.constant 0 : index
    %c0_19 = arith.constant 0 : index
    %c17 = arith.constant 17 : index
    %16 = vector.load %arg1[%c0_18, %c0_19, %c17] : memref<1x4x256xf32, #tpu.memory_space<vmem>>, vector<1x4x239xf32>
    %17 = vector.shape_cast %16 : vector<1x4x239xf32> to vector<4x239xf32>
    %c16_20 = arith.constant 16 : index
    %c0_21 = arith.constant 0 : index
    %18 = vector.load %arg7[%c16_20, %c0_21] : memref<36x256xf32, #tpu.memory_space<vmem>>, vector<4x239xf32>
    tpu.vector_store %arg7[%c16_20, %c0_21], %17 {strides = array<i32>} : memref<36x256xf32, #tpu.memory_space<vmem>>, vector<4x239xf32>,
    %c0_22 = arith.constant 0 : index
    %c0_23 = arith.constant 0 : index
    %c18 = arith.constant 18 : index
    %19 = vector.load %arg1[%c0_22, %c0_23, %c18] : memref<1x4x256xf32, #tpu.memory_space<vmem>>, vector<1x4x238xf32>
    %20 = vector.shape_cast %19 : vector<1x4x238xf32> to vector<4x238xf32>
    %c20 = arith.constant 20 : index
    %c0_24 = arith.constant 0 : index
    %21 = vector.load %arg7[%c20, %c0_24] : memref<36x256xf32, #tpu.memory_space<vmem>>, vector<4x238xf32>
    tpu.vector_store %arg7[%c20, %c0_24], %20 {strides = array<i32>} : memref<36x256xf32, #tpu.memory_space<vmem>>, vector<4x238xf32>,
    %c0_25 = arith.constant 0 : index
    %c0_26 = arith.constant 0 : index
    %c32 = arith.constant 32 : index
    %22 = vector.load %arg1[%c0_25, %c0_26, %c32] : memref<1x4x256xf32, #tpu.memory_space<vmem>>, vector<1x4x224xf32>
    %23 = vector.shape_cast %22 : vector<1x4x224xf32> to vector<4x224xf32>
    %c24 = arith.constant 24 : index
    %c0_27 = arith.constant 0 : index
    %24 = vector.load %arg7[%c24, %c0_27] : memref<36x256xf32, #tpu.memory_space<vmem>>, vector<4x224xf32>
    tpu.vector_store %arg7[%c24, %c0_27], %23 {strides = array<i32>} : memref<36x256xf32, #tpu.memory_space<vmem>>, vector<4x224xf32>,
    %c0_28 = arith.constant 0 : index
    %c0_29 = arith.constant 0 : index
    %c33 = arith.constant 33 : index
    %25 = vector.load %arg1[%c0_28, %c0_29, %c33] : memref<1x4x256xf32, #tpu.memory_space<vmem>>, vector<1x4x223xf32>
    %26 = vector.shape_cast %25 : vector<1x4x223xf32> to vector<4x223xf32>
    %c28 = arith.constant 28 : index
    %c0_30 = arith.constant 0 : index
    %27 = vector.load %arg7[%c28, %c0_30] : memref<36x256xf32, #tpu.memory_space<vmem>>, vector<4x223xf32>
    tpu.vector_store %arg7[%c28, %c0_30], %26 {strides = array<i32>} : memref<36x256xf32, #tpu.memory_space<vmem>>, vector<4x223xf32>,
    %c0_31 = arith.constant 0 : index
    %c0_32 = arith.constant 0 : index
    %c34 = arith.constant 34 : index
    %28 = vector.load %arg1[%c0_31, %c0_32, %c34] : memref<1x4x256xf32, #tpu.memory_space<vmem>>, vector<1x4x222xf32>
    %29 = vector.shape_cast %28 : vector<1x4x222xf32> to vector<4x222xf32>
    %c32_33 = arith.constant 32 : index
    %c0_34 = arith.constant 0 : index
    %30 = vector.load %arg7[%c32_33, %c0_34] : memref<36x256xf32, #tpu.memory_space<vmem>>, vector<4x222xf32>
    tpu.vector_store %arg7[%c32_33, %c0_34], %29 {strides = array<i32>} : memref<36x256xf32, #tpu.memory_space<vmem>>, vector<4x222xf32>,
    %c0_35 = arith.constant 0 : index
    %c0_36 = arith.constant 0 : index
    %31 = vector.load %arg2[%c0_35, %c0_36] : memref<8x36xbf16, #tpu.memory_space<vmem>>, vector<8x36xbf16>
    %c0_37 = arith.constant 0 : index
    %c0_38 = arith.constant 0 : index
    %32 = vector.load %arg7[%c0_37, %c0_38] : memref<36x256xf32, #tpu.memory_space<vmem>>, vector<36x256xf32>
    %33 = arith.truncf %32 : vector<36x256xf32> to vector<36x256xbf16>
    %cst_39 = arith.constant dense<0.000000e+00> : vector<8x256xf32>
    %34 = tpu.matmul %31, %33, %cst_39 {dimension_numbers = #tpu.dot_dimension_numbers<[1], [0], [0], [1], [0, 0, 1, 1], [], []>} : vector<8x36xbf16>, vector<36x256xbf16>, vector<8x256xf32> -> vector<8x256xf32>
    %c0_40 = arith.constant 0 : index
    %c0_41 = arith.constant 0 : index
    %35 = vector.load %arg3[%c0_40, %c0_41] : memref<8x1xf32, #tpu.memory_space<vmem>>, vector<8x1xf32>
    %36 = vector.broadcast %35 : vector<8x1xf32> to vector<8x256xf32>
    %37 = arith.addf %34, %36 : vector<8x256xf32>
    %cst_42 = arith.constant 0.000000e+00 : f32
    %38 = vector.broadcast %cst_42 : f32 to vector<8x256xf32>
    %39 = arith.maximumf %37, %38 : vector<8x256xf32>
    %c0_43 = arith.constant 0 : index
    %c0_44 = arith.constant 0 : index
    %40 = vector.load %arg8[%c0_43, %c0_44] : memref<8x256xf32, #tpu.memory_space<vmem>>, vector<8x256xf32>
    tpu.vector_store %arg8[%c0_43, %c0_44], %39 {strides = array<i32>} : memref<8x256xf32, #tpu.memory_space<vmem>>, vector<8x256xf32>,
    %c0_45 = arith.constant 0 : index
    %c0_46 = arith.constant 0 : index
    %41 = vector.load %arg8[%c0_45, %c0_46] : memref<8x256xf32, #tpu.memory_space<vmem>>, vector<8x256xf32>
    %c0_47 = arith.constant 0 : index
    %c0_48 = arith.constant 0 : index
    %42 = vector.load %arg9[%c0_47, %c0_48] : memref<72x256xf32, #tpu.memory_space<vmem>>, vector<8x256xf32>
    tpu.vector_store %arg9[%c0_47, %c0_48], %41 {strides = array<i32>} : memref<72x256xf32, #tpu.memory_space<vmem>>, vector<8x256xf32>,
    %c0_49 = arith.constant 0 : index
    %c1_50 = arith.constant 1 : index
    %43 = vector.load %arg8[%c0_49, %c1_50] : memref<8x256xf32, #tpu.memory_space<vmem>>, vector<8x255xf32>
    %c8_51 = arith.constant 8 : index
    %c0_52 = arith.constant 0 : index
    %44 = vector.load %arg9[%c8_51, %c0_52] : memref<72x256xf32, #tpu.memory_space<vmem>>, vector<8x255xf32>
    tpu.vector_store %arg9[%c8_51, %c0_52], %43 {strides = array<i32>} : memref<72x256xf32, #tpu.memory_space<vmem>>, vector<8x255xf32>,
    %c0_53 = arith.constant 0 : index
    %c2_54 = arith.constant 2 : index
    %45 = vector.load %arg8[%c0_53, %c2_54] : memref<8x256xf32, #tpu.memory_space<vmem>>, vector<8x254xf32>
    %c16_55 = arith.constant 16 : index
    %c0_56 = arith.constant 0 : index
    %46 = vector.load %arg9[%c16_55, %c0_56] : memref<72x256xf32, #tpu.memory_space<vmem>>, vector<8x254xf32>
    tpu.vector_store %arg9[%c16_55, %c0_56], %45 {strides = array<i32>} : memref<72x256xf32, #tpu.memory_space<vmem>>, vector<8x254xf32>,
    %c0_57 = arith.constant 0 : index
    %c16_58 = arith.constant 16 : index
    %47 = vector.load %arg8[%c0_57, %c16_58] : memref<8x256xf32, #tpu.memory_space<vmem>>, vector<8x240xf32>
    %c24_59 = arith.constant 24 : index
    %c0_60 = arith.constant 0 : index
    %48 = vector.load %arg9[%c24_59, %c0_60] : memref<72x256xf32, #tpu.memory_space<vmem>>, vector<8x240xf32>
    tpu.vector_store %arg9[%c24_59, %c0_60], %47 {strides = array<i32>} : memref<72x256xf32, #tpu.memory_space<vmem>>, vector<8x240xf32>,
    %c0_61 = arith.constant 0 : index
    %c17_62 = arith.constant 17 : index
    %49 = vector.load %arg8[%c0_61, %c17_62] : memref<8x256xf32, #tpu.memory_space<vmem>>, vector<8x239xf32>
    %c32_63 = arith.constant 32 : index
    %c0_64 = arith.constant 0 : index
    %50 = vector.load %arg9[%c32_63, %c0_64] : memref<72x256xf32, #tpu.memory_space<vmem>>, vector<8x239xf32>
    tpu.vector_store %arg9[%c32_63, %c0_64], %49 {strides = array<i32>} : memref<72x256xf32, #tpu.memory_space<vmem>>, vector<8x239xf32>,
    %c0_65 = arith.constant 0 : index
    %c18_66 = arith.constant 18 : index
    %51 = vector.load %arg8[%c0_65, %c18_66] : memref<8x256xf32, #tpu.memory_space<vmem>>, vector<8x238xf32>
    %c40 = arith.constant 40 : index
    %c0_67 = arith.constant 0 : index
    %52 = vector.load %arg9[%c40, %c0_67] : memref<72x256xf32, #tpu.memory_space<vmem>>, vector<8x238xf32>
    tpu.vector_store %arg9[%c40, %c0_67], %51 {strides = array<i32>} : memref<72x256xf32, #tpu.memory_space<vmem>>, vector<8x238xf32>,
    %c0_68 = arith.constant 0 : index
    %c32_69 = arith.constant 32 : index
    %53 = vector.load %arg8[%c0_68, %c32_69] : memref<8x256xf32, #tpu.memory_space<vmem>>, vector<8x224xf32>
    %c48 = arith.constant 48 : index
    %c0_70 = arith.constant 0 : index
    %54 = vector.load %arg9[%c48, %c0_70] : memref<72x256xf32, #tpu.memory_space<vmem>>, vector<8x224xf32>
    tpu.vector_store %arg9[%c48, %c0_70], %53 {strides = array<i32>} : memref<72x256xf32, #tpu.memory_space<vmem>>, vector<8x224xf32>,
    %c0_71 = arith.constant 0 : index
    %c33_72 = arith.constant 33 : index
    %55 = vector.load %arg8[%c0_71, %c33_72] : memref<8x256xf32, #tpu.memory_space<vmem>>, vector<8x223xf32>
    %c56 = arith.constant 56 : index
    %c0_73 = arith.constant 0 : index
    %56 = vector.load %arg9[%c56, %c0_73] : memref<72x256xf32, #tpu.memory_space<vmem>>, vector<8x223xf32>
    tpu.vector_store %arg9[%c56, %c0_73], %55 {strides = array<i32>} : memref<72x256xf32, #tpu.memory_space<vmem>>, vector<8x223xf32>,
    %c0_74 = arith.constant 0 : index
    %c34_75 = arith.constant 34 : index
    %57 = vector.load %arg8[%c0_74, %c34_75] : memref<8x256xf32, #tpu.memory_space<vmem>>, vector<8x222xf32>
    %c64 = arith.constant 64 : index
    %c0_76 = arith.constant 0 : index
    %58 = vector.load %arg9[%c64, %c0_76] : memref<72x256xf32, #tpu.memory_space<vmem>>, vector<8x222xf32>
    tpu.vector_store %arg9[%c64, %c0_76], %57 {strides = array<i32>} : memref<72x256xf32, #tpu.memory_space<vmem>>, vector<8x222xf32>,
    %c0_77 = arith.constant 0 : index
    %c0_78 = arith.constant 0 : index
    %59 = vector.load %arg4[%c0_77, %c0_78] : memref<8x72xbf16, #tpu.memory_space<vmem>>, vector<8x72xbf16>
    %c0_79 = arith.constant 0 : index
    %c0_80 = arith.constant 0 : index
    %60 = vector.load %arg9[%c0_79, %c0_80] : memref<72x256xf32, #tpu.memory_space<vmem>>, vector<72x256xf32>
    %61 = arith.truncf %60 : vector<72x256xf32> to vector<72x256xbf16>
    %cst_81 = arith.constant dense<0.000000e+00> : vector<8x256xf32>
    %62 = tpu.matmul %59, %61, %cst_81 {dimension_numbers = #tpu.dot_dimension_numbers<[1], [0], [0], [1], [0, 0, 1, 1], [], []>} : vector<8x72xbf16>, vector<72x256xbf16>, vector<8x256xf32> -> vector<8x256xf32>
    %c0_82 = arith.constant 0 : index
    %c0_83 = arith.constant 0 : index
    %63 = vector.load %arg5[%c0_82, %c0_83] : memref<8x1xf32, #tpu.memory_space<vmem>>, vector<8x1xf32>
    %64 = vector.broadcast %63 : vector<8x1xf32> to vector<8x256xf32>
    %65 = arith.addf %62, %64 : vector<8x256xf32>
    %c0_84 = arith.constant 0 : index
    %c0_85 = arith.constant 0 : index
    %c0_86 = arith.constant 0 : index
    %66 = vector.load %arg6[%c0_84, %c0_85, %c0_86] : memref<1x8x256xf32, #tpu.memory_space<vmem>>, vector<1x8x256xf32>
    %67 = vector.shape_cast %66 : vector<1x8x256xf32> to vector<8x256xf32>
    %68 = vector.shape_cast %65 : vector<8x256xf32> to vector<1x8x256xf32>
    tpu.vector_store %arg6[%c0_84, %c0_85, %c0_86], %68 {strides = array<i32>} : memref<1x8x256xf32, #tpu.memory_space<vmem>>, vector<1x8x256xf32>,
    return
  }
  func.func @transform_0(%arg0: i32) -> (i32, i32, i32) {
    %c0_i32 = arith.constant 0 : i32
    %c0_i32_0 = arith.constant 0 : i32
    %c0_i32_1 = arith.constant 0 : i32
    return %arg0, %c0_i32, %c0_i32_0 : i32, i32, i32
  }
  func.func @transform_1(%arg0: i32) -> (i32, i32) {
    %c0_i32 = arith.constant 0 : i32
    %c0_i32_0 = arith.constant 0 : i32
    %c0_i32_1 = arith.constant 0 : i32
    return %c0_i32, %c0_i32_0 : i32, i32
  }
  func.func @transform_2(%arg0: i32) -> (i32, i32) {
    %c0_i32 = arith.constant 0 : i32
    %c0_i32_0 = arith.constant 0 : i32
    %c0_i32_1 = arith.constant 0 : i32
    return %c0_i32, %c0_i32_0 : i32, i32
  }
  func.func @transform_3(%arg0: i32) -> (i32, i32) {
    %c0_i32 = arith.constant 0 : i32
    %c0_i32_0 = arith.constant 0 : i32
    %c0_i32_1 = arith.constant 0 : i32
    return %c0_i32, %c0_i32_0 : i32, i32
  }
  func.func @transform_4(%arg0: i32) -> (i32, i32) {
    %c0_i32 = arith.constant 0 : i32
    %c0_i32_0 = arith.constant 0 : i32
    %c0_i32_1 = arith.constant 0 : i32
    return %c0_i32, %c0_i32_0 : i32, i32
  }
  func.func @transform_5(%arg0: i32) -> (i32, i32, i32) {
    %c0_i32 = arith.constant 0 : i32
    %c0_i32_0 = arith.constant 0 : i32
    %c0_i32_1 = arith.constant 0 : i32
    return %arg0, %c0_i32, %c0_i32_0 : i32, i32, i32
  }
}

</mosaic_0001>

<llo_original>
// kernel: tpu_custom_call.1
$region0: #{tpu_custom_call.1}
  #allocation0 [shape = 'u32[]', space=smem, size = 0x4, offset = 0x4, fixed_abs, tag = 'smem constant byte address 0x4 - core index']
  #allocation1 [shape = 'u32[144,128]{1,0:T(1,128)}', space=vmem, size = 0x12000, scoped, tag = 'internal scratch']
  #allocation2 [shape = 'f32[36,256]{1,0:T(8,128)}', space=vmem, size = 0xa000, scoped, tag = 'scratch operand']
  #allocation3 [shape = 'f32[8,256]{1,0:T(8,128)}', space=vmem, size = 0x2000, scoped, tag = 'scratch operand']
  #allocation4 [shape = 'f32[72,256]{1,0:T(8,128)}', space=vmem, size = 0x12000, scoped, tag = 'scratch operand']
  %s0 = inlined_call_operand.vmem [shape: f32[2,4,256], index: 0, kind: input, shape index: {}]
  %s1 = inlined_call_operand.hbm [shape: bf16[8,36], index: 1, kind: input, shape index: {}]
  %s2 = inlined_call_operand.vmem [shape: f32[8,1], index: 2, kind: input, shape index: {}]
  %s3 = inlined_call_operand.vmem [shape: bf16[8,72], index: 3, kind: input, shape index: {}]
  %s4 = inlined_call_operand.vmem [shape: f32[8,1], index: 4, kind: input, shape index: {}]
  %s5 = inlined_call_operand.hbm [shape: f32[2,8,256], index: 5, kind: output, shape index: {}]
  %s6 = sld [smem:[#allocation0]]
  $region57: #{tpu_custom_call.1} parent=0
    _
  %s8 = ssub.s32 1, %s6
  %s9 = scalar_select 0, %s8, %s6
  $region1: #{tpu_custom_call.1} parent=0
    #allocation5 [shape = 'u8[2048]{0}', space=vmem, size = 0x800, scoped, tag = 'input window, operand 1, single buffered']
    #allocation6 [shape = 's32[2]{0}', space=sflag, size = 0x8, scoped, tag = 'scoped memory for tpu_custom_call.1']
    #allocation7 [shape = 's32[2]{0}', space=sflag, size = 0x8, scoped, tag = 'scoped memory for tpu_custom_call.1']
    #allocation8 [shape = 'u8[16384]{0}', space=vmem, size = 0x4000, scoped, tag = 'output window, operand 0']
    %10 = vsyncpa [#allocation6], 0
    %11 = vsyncpa [#allocation7], 0
    %s12 = scalar_lea.sflag [#allocation7], 1
    %13 = vsyncpa %s12, 0
    loop: start=0, step=1, limit=4
    $region2: #{tpu_custom_call.1} parent=1 // loop_pre_header
      _
    $region3: #{tpu_custom_call.1} parent=1 // loop_header
      %s15 = sphi 0, %s19
      %p16 = scmp.ge.s32.totalorder %s15, 4
      %s25 = sphi 0, %s27
      %s28 = sphi 0, %s25
      %s29 = sphi 0, %s28
      %s45 = sphi 0, %s29
      %s49 = sphi 0, %s49
      %s51 = sphi 0, %s49
      %s52 = sphi 0, %s51
      %s66 = sphi 0, %s52
      %s70 = sphi 0, %s70
      %s72 = sphi 0, %s70
      %s73 = sphi 0, %s72
      %s87 = sphi 0, %s73
      %s91 = sphi 0, %s91
      %s93 = sphi 0, %s91
      %s94 = sphi 0, %s93
      %s108 = sphi 0, %s94
      %s112 = sphi 0, %s112
      %s114 = sphi 0, %s112
      %s115 = sphi 0, %s114
      %s129 = sphi 0, %s115
      %s135 = sphi 0, %s137
      %s138 = sphi 0, %s135
      %s139 = sphi 0, %s138
      %s155 = sphi 0, %s139
    $region4: #{tpu_custom_call.1} parent=1 // loop_header_branch
      %18 = sbr.rel (%p16) target = $region8
    $region5: #{tpu_custom_call.1} parent=1 // loop_body
      %s20 = ssub.s32 %s15, 1
      %s21 = ssub.s32 %s15, 2
      %s22 = sadd.s32 %s15, 1
      %s23 = ssub.s32 %s15, %s22
      %p24 = scmp.eq.s32.totalorder %s23, 0
      %s26 = sadd.s32 %s25, 1
      %s27 = scalar_select %p24, %s25, %s26
      %p30 = pneg %p24
      %p31 = scmp.eq.s32.totalorder %s15, 1
      %p32 = por %p30, %p31
      %p33 = scmp.ne.s32.totalorder %s25, %s28
      %p34 = scmp.eq.s32.totalorder %s15, 0
      %p35 = por %p33, %p34
      %p36 = scmp.ne.s32.totalorder %s25, %s28
      %p37 = scmp.eq.s32.totalorder %s20, 1
      %p38 = por %p36, %p37
      %p39 = scmp.ne.s32.totalorder %s28, %s29
      %p40 = scmp.eq.s32.totalorder %s20, 0
      %p41 = por %p39, %p40
      %p42 = scmp.ne.s32.totalorder %s28, %s29
      %p43 = scmp.eq.s32.totalorder %s21, 1
      %p44 = por %p42, %p43
      %p46 = scmp.ne.s32.totalorder %s29, %s45
      %p47 = scmp.eq.s32.totalorder %s21, 0
      %p48 = por %p46, %p47
      %s50 = sadd.s32 %s49, 1
      %p53 = scmp.eq.s32.totalorder %s15, 1
      %p54 = scmp.ne.s32.totalorder %s49, %s51
      %p55 = scmp.eq.s32.totalorder %s15, 0
      %p56 = por %p54, %p55
      %p57 = scmp.ne.s32.totalorder %s49, %s51
      %p58 = scmp.eq.s32.totalorder %s20, 1
      %p59 = por %p57, %p58
      %p60 = scmp.ne.s32.totalorder %s51, %s52
      %p61 = scmp.eq.s32.totalorder %s20, 0
      %p62 = por %p60, %p61
      %p63 = scmp.ne.s32.totalorder %s51, %s52
      %p64 = scmp.eq.s32.totalorder %s21, 1
      %p65 = por %p63, %p64
      %p67 = scmp.ne.s32.totalorder %s52, %s66
      %p68 = scmp.eq.s32.totalorder %s21, 0
      %p69 = por %p67, %p68
      %s71 = sadd.s32 %s70, 1
      %p74 = scmp.eq.s32.totalorder %s15, 1
      %p75 = scmp.ne.s32.totalorder %s70, %s72
      %p76 = scmp.eq.s32.totalorder %s15, 0
      %p77 = por %p75, %p76
      %p78 = scmp.ne.s32.totalorder %s70, %s72
      %p79 = scmp.eq.s32.totalorder %s20, 1
      %p80 = por %p78, %p79
      %p81 = scmp.ne.s32.totalorder %s72, %s73
      %p82 = scmp.eq.s32.totalorder %s20, 0
      %p83 = por %p81, %p82
      %p84 = scmp.ne.s32.totalorder %s72, %s73
      %p85 = scmp.eq.s32.totalorder %s21, 1
      %p86 = por %p84, %p85
      %p88 = scmp.ne.s32.totalorder %s73, %s87
      %p89 = scmp.eq.s32.totalorder %s21, 0
      %p90 = por %p88, %p89
      %s92 = sadd.s32 %s91, 1
      %p95 = scmp.eq.s32.totalorder %s15, 1
      %p96 = scmp.ne.s32.totalorder %s91, %s93
      %p97 = scmp.eq.s32.totalorder %s15, 0
      %p98 = por %p96, %p97
      %p99 = scmp.ne.s32.totalorder %s91, %s93
      %p100 = scmp.eq.s32.totalorder %s20, 1
      %p101 = por %p99, %p100
      %p102 = scmp.ne.s32.totalorder %s93, %s94
      %p103 = scmp.eq.s32.totalorder %s20, 0
      %p104 = por %p102, %p103
      %p105 = scmp.ne.s32.totalorder %s93, %s94
      %p106 = scmp.eq.s32.totalorder %s21, 1
      %p107 = por %p105, %p106
      %p109 = scmp.ne.s32.totalorder %s94, %s108
      %p110 = scmp.eq.s32.totalorder %s21, 0
      %p111 = por %p109, %p110
      %s113 = sadd.s32 %s112, 1
      %p116 = scmp.eq.s32.totalorder %s15, 1
      %p117 = scmp.ne.s32.totalorder %s112, %s114
      %p118 = scmp.eq.s32.totalorder %s15, 0
      %p119 = por %p117, %p118
      %p120 = scmp.ne.s32.totalorder %s112, %s114
      %p121 = scmp.eq.s32.totalorder %s20, 1
      %p122 = por %p120, %p121
      %p123 = scmp.ne.s32.totalorder %s114, %s115
      %p124 = scmp.eq.s32.totalorder %s20, 0
      %p125 = por %p123, %p124
      %p126 = scmp.ne.s32.totalorder %s114, %s115
      %p127 = scmp.eq.s32.totalorder %s21, 1
      %p128 = por %p126, %p127
      %p130 = scmp.ne.s32.totalorder %s115, %s129
      %p131 = scmp.eq.s32.totalorder %s21, 0
      %p132 = por %p130, %p131
      %s133 = ssub.s32 %s15, %s22
      %p134 = scmp.eq.s32.totalorder %s133, 0
      %s136 = sadd.s32 %s135, 1
      %s137 = scalar_select %p134, %s135, %s136
      %p140 = pneg %p134
      %p141 = scmp.eq.s32.totalorder %s15, 1
      %p142 = por %p140, %p141
      %p143 = scmp.ne.s32.totalorder %s135, %s138
      %p144 = scmp.eq.s32.totalorder %s15, 0
      %p145 = por %p143, %p144
      %p146 = scmp.ne.s32.totalorder %s135, %s138
      %p147 = scmp.eq.s32.totalorder %s20, 1
      %p148 = por %p146, %p147
      %p149 = scmp.ne.s32.totalorder %s138, %s139
      %p150 = scmp.eq.s32.totalorder %s20, 0
      %p151 = por %p149, %p150
      %p152 = scmp.ne.s32.totalorder %s138, %s139
      %p153 = scmp.eq.s32.totalorder %s21, 1
      %p154 = por %p152, %p153
      %p156 = scmp.ne.s32.totalorder %s139, %s155
      %p157 = scmp.eq.s32.totalorder %s21, 0
      %p158 = por %p156, %p157
      %p159 = scmp.le.s32.totalorder 1, %s15
      %p160 = scmp.lt.s32.totalorder %s15, 3
      %p161 = pnand %p159, %p160
      %p162 = pneg %p161
      // Predicated region
      $region9: #{tpu_custom_call.1} parent=5 // pred_check
        _
      $region10: #{tpu_custom_call.1} parent=5 // pred_check_branch
        %164 = sbr.rel (%p161) target = $region12
      $region11: #{tpu_custom_call.1} parent=5 // pred_region
        %s165 = ssub.s32 %s15, 1
        // Predicated region
        $region13: #{tpu_custom_call.1} parent=11 // pred_check
          %p166 = pneg %p62
        $region14: #{tpu_custom_call.1} parent=11 // pred_check_branch
          %168 = sbr.rel (%p166) target = $region16
        $region15: #{tpu_custom_call.1} parent=11 // pred_region
          %s170 = ssub.s32 64, 64
          %171 = vsyncadd [#allocation6], %s170
          %s173 = sshll.u32 [#allocation5], 4
          %s174 = int_to_ptr.vmem [resolvable:$true] %s173
          %176 = dma.hbm_to_vmem [thread:$0]  %s1, 64, %s174, [#allocation6]
        $region16: #{tpu_custom_call.1} parent=11 // pred_fallthru
          _
        // Predicated region
        $region17: #{tpu_custom_call.1} parent=11 // pred_check
          %p177 = pneg %p83
        $region18: #{tpu_custom_call.1} parent=11 // pred_check_branch
          %179 = sbr.rel (%p177) target = $region20
        $region19: #{tpu_custom_call.1} parent=11 // pred_region
          _
        $region20: #{tpu_custom_call.1} parent=11 // pred_fallthru
          _
        // Predicated region
        $region21: #{tpu_custom_call.1} parent=11 // pred_check
          %p180 = pneg %p104
        $region22: #{tpu_custom_call.1} parent=11 // pred_check_branch
          %182 = sbr.rel (%p180) target = $region24
        $region23: #{tpu_custom_call.1} parent=11 // pred_region
          _
        $region24: #{tpu_custom_call.1} parent=11 // pred_fallthru
          _
        // Predicated region
        $region25: #{tpu_custom_call.1} parent=11 // pred_check
          %p183 = pneg %p125
        $region26: #{tpu_custom_call.1} parent=11 // pred_check_branch
          %185 = sbr.rel (%p183) target = $region28
        $region27: #{tpu_custom_call.1} parent=11 // pred_region
          _
        $region28: #{tpu_custom_call.1} parent=11 // pred_fallthru
          _
      $region12: #{tpu_custom_call.1} parent=5 // pred_fallthru
        _
      %p186 = scmp.lt.s32.totalorder %s15, 2
      // Predicated region
      $region29: #{tpu_custom_call.1} parent=5 // pred_check
        %p187 = pneg %p186
      $region30: #{tpu_custom_call.1} parent=5 // pred_check_branch
        %189 = sbr.rel (%p187) target = $region32
      $region31: #{tpu_custom_call.1} parent=5 // pred_region
        // Predicated region
        $region33: #{tpu_custom_call.1} parent=31 // pred_check
          %p190 = pneg %p35
        $region34: #{tpu_custom_call.1} parent=31 // pred_check_branch
          %192 = sbr.rel (%p190) target = $region36
        $region35: #{tpu_custom_call.1} parent=31 // pred_region
          %p193 = scmp.lt.s32.totalorder %s15, 1
          %s194 = scalar_select %p193, %s15, 1
          %s195 = smul.addr %s194, 2
          %s196 = smul.addr %s195, 4
          %s197 = scalar_lea.vmem %s0, %s196
        $region36: #{tpu_custom_call.1} parent=31 // pred_fallthru
          _
      $region32: #{tpu_custom_call.1} parent=5 // pred_fallthru
        _
      %p198 = scmp.le.s32.totalorder 1, %s15
      %p199 = scmp.lt.s32.totalorder %s15, 3
      %p200 = pnand %p198, %p199
      %p201 = pneg %p200
      // Predicated region
      $region37: #{tpu_custom_call.1} parent=5 // pred_check
        _
      $region38: #{tpu_custom_call.1} parent=5 // pred_check_branch
        %203 = sbr.rel (%p200) target = $region40
      $region39: #{tpu_custom_call.1} parent=5 // pred_region
        %s204 = ssub.s32 %s15, 1
        // Predicated region
        $region41: #{tpu_custom_call.1} parent=39 // pred_check
          %p205 = pneg %p62
        $region42: #{tpu_custom_call.1} parent=39 // pred_check_branch
          %207 = sbr.rel (%p205) target = $region44
        $region43: #{tpu_custom_call.1} parent=39 // pred_region
          %208 = dma.done [#allocation6], 64
        $region44: #{tpu_custom_call.1} parent=39 // pred_fallthru
          _
        %p209 = scmp.lt.s32.totalorder %s20, 1
        %s210 = scalar_select %p209, %s20, 1
        %s211 = smul.addr %s210, 2
        %s212 = smul.addr %s211, 4
        %s213 = scalar_lea.vmem %s0, %s212
        %p214 = pneg %p41
        %p215 = pneg %p38
        %p216 = pneg %p62
        %p217 = pneg %p59
        %p218 = pneg %p83
        %p219 = pneg %p80
        %p220 = pneg %p104
        %p221 = pneg %p101
        %p222 = pneg %p125
        %p223 = pneg %p122
        %p224 = pneg %p151
        %p225 = pneg %p148
        %s226 = sand.u32 %s138, 1
        %s227 = scalar_lea.sflag [#allocation7], %s226
        %s228 = sand.u32 %s138, 1
        %s229 = smul.addr %s228, 16
        %s230 = scalar_lea.vmem [#allocation8], %s229
        %p231 = scmp.lt.s32.totalorder %s20, 1
        %s232 = scalar_select %p231, %s20, 1
        %s233 = smul.addr %s232, 2
        %s234 = smul.addr %s233, 4
        %s235 = scalar_lea.vmem %s0, %s234
        %237 = vst [vmem:[#allocation2] sm:$0xff] 0.0
        %238 = vst [vmem:[#allocation2 + $0x8] sm:$0xff] 0.0
        %239 = vst [vmem:[#allocation2 + $0x10] sm:$0xff] 0.0
        %240 = vst [vmem:[#allocation2 + $0x18] sm:$0xff] 0.0
        %241 = vst [vmem:[#allocation2 + $0x20] sm:$0xff] 0.0
        %242 = vst [vmem:[#allocation2 + $0x28] sm:$0xff] 0.0
        %243 = vst [vmem:[#allocation2 + $0x30] sm:$0xff] 0.0
        %244 = vst [vmem:[#allocation2 + $0x38] sm:$0xff] 0.0
        %245 = vst [vmem:[#allocation2 + $0x40] sm:$0xf] 0.0
        %246 = vst [vmem:[#allocation2 + $0x48] sm:$0xf] 0.0
        %247 = vst [vmem:[#allocation4] sm:$0xff] 0.0
        %248 = vst [vmem:[#allocation4 + $0x8] sm:$0xff] 0.0
        %249 = vst [vmem:[#allocation4 + $0x10] sm:$0xff] 0.0
        %250 = vst [vmem:[#allocation4 + $0x18] sm:$0xff] 0.0
        %251 = vst [vmem:[#allocation4 + $0x20] sm:$0xff] 0.0
        %252 = vst [vmem:[#allocation4 + $0x28] sm:$0xff] 0.0
        %253 = vst [vmem:[#allocation4 + $0x30] sm:$0xff] 0.0
        %254 = vst [vmem:[#allocation4 + $0x38] sm:$0xff] 0.0
        %255 = vst [vmem:[#allocation4 + $0x40] sm:$0xff] 0.0
        %256 = vst [vmem:[#allocation4 + $0x48] sm:$0xff] 0.0
        %257 = vst [vmem:[#allocation4 + $0x50] sm:$0xff] 0.0
        %258 = vst [vmem:[#allocation4 + $0x58] sm:$0xff] 0.0
        %259 = vst [vmem:[#allocation4 + $0x60] sm:$0xff] 0.0
        %260 = vst [vmem:[#allocation4 + $0x68] sm:$0xff] 0.0
        %261 = vst [vmem:[#allocation4 + $0x70] sm:$0xff] 0.0
        %262 = vst [vmem:[#allocation4 + $0x78] sm:$0xff] 0.0
        %263 = vst [vmem:[#allocation4 + $0x80] sm:$0xff] 0.0
        %264 = vst [vmem:[#allocation4 + $0x88] sm:$0xff] 0.0
        %v265 = vld [vmem:[%s235] sm:$0xff]
        %v267 = vcombine.high %v265, %v265
        %269 = vst [vmem:[#allocation2] sm:$0xf] %v265
        %270 = vst [vmem:[#allocation2 + $0x8] sm:$0xf] %v267
        %v271 = vld [vmem:[%s235] sm:$0xff]
        %v273 = vcombine.low %v271, %v271
        %274 = vrot.lane.b32.xlu0 %v273, 127
        %v275 = vpop.permute.xlu0 %274
        %276 = vrot.lane.b32.xlu0 %v271, 127
        %v277 = vpop.permute.xlu0 %276
        %vm278 = vcmask 1039360
        %v279 = vsel %vm278, %v275, %v277
        %282 = vst [vmem:[#allocation2] sm:$0xf0] %v279
        %vm283 = vcmask 1039364
        %284 = vst.msk [vmem:[#allocation2 + $0x8] sm:$0xf0] %vm283, %v277
        %v285 = vld [vmem:[%s235] sm:$0xff]
        %v287 = vcombine.high %v285, %v285
        %288 = vrot.lane.b32.xlu0 %v285, 126
        %v289 = vpop.permute.xlu0 %288
        %290 = vrot.lane.b32.xlu0 %v287, 126
        %v291 = vpop.permute.xlu0 %290
        %vm292 = vcmask 1031168
        %v293 = vsel %vm292, %v289, %v291
        %296 = vst [vmem:[#allocation2 + $0x10] sm:$0xf] %v293
        %vm297 = vcmask 1027072
        %298 = vst.msk [vmem:[#allocation2 + $0x18] sm:$0xf] %vm297, %v291
        %v299 = vld [vmem:[%s235] sm:$0xff]
        %v301 = vcombine.low %v299, %v299
        %302 = vrot.lane.b32.xlu0 %v301, 112
        %v303 = vpop.permute.xlu0 %302
        %304 = vrot.lane.b32.xlu0 %v299, 112
        %v305 = vpop.permute.xlu0 %304
        %vm306 = vcmask 916480
        %v307 = vsel %vm306, %v303, %v305
        %310 = vst [vmem:[#allocation2 + $0x10] sm:$0xf0] %v307
        %vm311 = vcmask 916484
        %312 = vst.msk [vmem:[#allocation2 + $0x18] sm:$0xf0] %vm311, %v305
        %v313 = vld [vmem:[%s235] sm:$0xff]
        %v315 = vcombine.high %v313, %v313
        %316 = vrot.lane.b32.xlu0 %v313, 111
        %v317 = vpop.permute.xlu0 %316
        %318 = vrot.lane.b32.xlu0 %v315, 111
        %v319 = vpop.permute.xlu0 %318
        %vm320 = vcmask 908288
        %v321 = vsel %vm320, %v317, %v319
        %324 = vst [vmem:[#allocation2 + $0x20] sm:$0xf] %v321
        %vm325 = vcmask 904192
        %326 = vst.msk [vmem:[#allocation2 + $0x28] sm:$0xf] %vm325, %v319
        %v327 = vld [vmem:[%s235] sm:$0xff]
        %v329 = vcombine.low %v327, %v327
        %330 = vrot.lane.b32.xlu0 %v329, 110
        %v331 = vpop.permute.xlu0 %330
        %332 = vrot.lane.b32.xlu0 %v327, 110
        %v333 = vpop.permute.xlu0 %332
        %vm334 = vcmask 900096
        %v335 = vsel %vm334, %v331, %v333
        %338 = vst [vmem:[#allocation2 + $0x20] sm:$0xf0] %v335
        %vm339 = vcmask 900100
        %340 = vst.msk [vmem:[#allocation2 + $0x28] sm:$0xf0] %vm339, %v333
        %v341 = vld [vmem:[%s235] sm:$0xff]
        %v343 = vcombine.high %v341, %v341
        %344 = vrot.lane.b32.xlu0 %v341, 96
        %v345 = vpop.permute.xlu0 %344
        %346 = vrot.lane.b32.xlu0 %v343, 96
        %v347 = vpop.permute.xlu0 %346
        %vm348 = vcmask 785408
        %v349 = vsel %vm348, %v345, %v347
        %352 = vst [vmem:[#allocation2 + $0x30] sm:$0xf] %v349
        %vm353 = vcmask 781312
        %354 = vst.msk [vmem:[#allocation2 + $0x38] sm:$0xf] %vm353, %v347
        %v355 = vld [vmem:[%s235] sm:$0xff]
        %v357 = vcombine.low %v355, %v355
        %358 = vrot.lane.b32.xlu0 %v357, 95
        %v359 = vpop.permute.xlu0 %358
        %360 = vrot.lane.b32.xlu0 %v355, 95
        %v361 = vpop.permute.xlu0 %360
        %vm362 = vcmask 777216
        %v363 = vsel %vm362, %v359, %v361
        %366 = vst [vmem:[#allocation2 + $0x30] sm:$0xf0] %v363
        %vm367 = vcmask 777220
        %368 = vst.msk [vmem:[#allocation2 + $0x38] sm:$0xf0] %vm367, %v361
        %v369 = vld [vmem:[%s235] sm:$0xff]
        %v371 = vcombine.high %v369, %v369
        %372 = vrot.lane.b32.xlu0 %v369, 94
        %v373 = vpop.permute.xlu0 %372
        %374 = vrot.lane.b32.xlu0 %v371, 94
        %v375 = vpop.permute.xlu0 %374
        %vm376 = vcmask 769024
        %v377 = vsel %vm376, %v373, %v375
        %380 = vst [vmem:[#allocation2 + $0x40] sm:$0xf] %v377
        %vm381 = vcmask 764928
        %382 = vst.msk [vmem:[#allocation2 + $0x48] sm:$0xf] %vm381, %v375
        %v383 = vld [vmem:[#allocation5] sm:$0xf]
        %v384 = vld [vmem:[#allocation2] sm:$0xff]
        %v385 = vld [vmem:[#allocation2 + $0x8] sm:$0xff]
        %v386 = vld [vmem:[#allocation2 + $0x10] sm:$0xff]
        %v387 = vld [vmem:[#allocation2 + $0x18] sm:$0xff]
        %v388 = vld [vmem:[#allocation2 + $0x20] sm:$0xff]
        %v389 = vld [vmem:[#allocation2 + $0x28] sm:$0xff]
        %v390 = vld [vmem:[#allocation2 + $0x30] sm:$0xff]
        %v391 = vld [vmem:[#allocation2 + $0x38] sm:$0xff]
        %v392 = vld [vmem:[#allocation2 + $0x40] sm:$0xf]
        %v393 = vld [vmem:[#allocation2 + $0x48] sm:$0xf]
        %v394 = vpack.c.bf16 %v386, %v384
        %v395 = vpack.c.bf16 %v387, %v385
        %v396 = vpack.c.bf16 %v390, %v388
        %v397 = vpack.c.bf16 %v391, %v389
        %v398 = vpack.c.bf16 %v392, %v392
        %v399 = vpack.c.bf16 %v393, %v393
        %v400 = vld [vmem:[%s2] sm:$0xff]
        %402 = vset.pattern.permute.xlu0 0
        %403 = vperm.xlu0 %402, %v400
        %v404 = vpop.permute.xlu0 %403
        %vm406 = vcmask 293888
        %v408 = vsel %vm406, %v383, 0
        %vm410 = vcmask 1041408
        %v412 = vsel %vm410, %v398, 0
        %v415 = vsel %vm410, %v399, 0
        %417 = vmatprep.subr.bf16.mxu0 0
        %418 = vmatpush1.bf16.msra.mxu0 0
        %419 = vmatprep.subr.bf16.mxu0 0
        %420 = vmatpush1.bf16.msra.mxu0 0
        %421 = vmatprep.subr.bf16.mxu0 0
        %422 = vmatpush1.bf16.msra.mxu0 0
        %423 = vmatprep.subr.bf16.mxu0 0
        %424 = vmatpush1.bf16.msra.mxu0 0
        %425 = vmatprep.subr.bf16.mxu0 0
        %426 = vmatpush1.bf16.msra.mxu0 0
        %427 = vmatprep.subr.bf16.mxu0 %v415
        %428 = vmatpush1.bf16.msra.mxu0 %v412
        %429 = vmatprep.subr.bf16.mxu0 %v397
        %430 = vmatpush1.bf16.msra.mxu0 %v396
        %431 = vmatprep.subr.bf16.mxu0 %v395
        %432 = vmatpush1.bf16.msra.mxu0 %v394
        %433 = vmatprep.subr.bf16.mxu0 0
        %434 = vmatpush2.bf16.msra.mxu0 0
        %435 = vmatprep.subr.bf16.mxu0 0
        %436 = vmatpush2.bf16.msra.mxu0 0
        %437 = vmatprep.subr.bf16.mxu0 0
        %438 = vmatpush2.bf16.msra.mxu0 0
        %439 = vmatprep.subr.bf16.mxu0 0
        %440 = vmatpush2.bf16.msra.mxu0 0
        %441 = vmatprep.subr.bf16.mxu0 0
        %442 = vmatpush2.bf16.msra.mxu0 0
        %443 = vmatprep.subr.bf16.mxu0 0
        %444 = vmatpush2.bf16.msra.mxu0 0
        %445 = vmatprep.subr.bf16.mxu0 0
        %446 = vmatpush2.bf16.msra.mxu0 0
        %447 = vmatprep.subr.bf16.mxu0 0
        %448 = vmatpush2.bf16.msra.mxu0 0
        %449 = vmatprep.mubr.bf16.mxu0 0
        %450 = vmatmul.mubr.bf16.gmra.mxu0 %v408
        %v451 = vpop.f32.mrf.mxu0
        %v452 = vadd.f32 %v404, %v451
        %v453 = vpop.f32.mrf.mxu0
        %v454 = vadd.f32 %v404, %v453
        %v455 = vpop.f32.mrf.mxu0
        %v456 = vpop.f32.mrf.mxu0
        %457 = vdwg.mxu0
        %v458 = vmax.f32 %v452, 0.0
        %v459 = vmax.f32 %v454, 0.0
        %460 = vst [vmem:[#allocation3] sm:$0xff] %v458
        %461 = vst [vmem:[#allocation3 + $0x8] sm:$0xff] %v459
        %v462 = vld [vmem:[#allocation3] sm:$0xff]
        %v463 = vld [vmem:[#allocation3 + $0x8] sm:$0xff]
        %464 = vst [vmem:[#allocation4] sm:$0xff] %v462
        %465 = vst [vmem:[#allocation4 + $0x8] sm:$0xff] %v463
        %v466 = vld [vmem:[#allocation3] sm:$0xff]
        %v467 = vld [vmem:[#allocation3 + $0x8] sm:$0xff]
        %470 = vrot.lane.b32.xlu0 %v466, 127
        %v471 = vpop.permute.xlu0 %470
        %472 = vrot.lane.b32.xlu0 %v467, 127
        %v473 = vpop.permute.xlu0 %472
        %v474 = vsel %vm278, %v471, %v473
        %477 = vst [vmem:[#allocation4 + $0x10] sm:$0xff] %v474
        %478 = vst.msk [vmem:[#allocation4 + $0x18] sm:$0xff] %vm278, %v473
        %v479 = vld [vmem:[#allocation3] sm:$0xff]
        %v480 = vld [vmem:[#allocation3 + $0x8] sm:$0xff]
        %483 = vrot.lane.b32.xlu0 %v479, 126
        %v484 = vpop.permute.xlu0 %483
        %485 = vrot.lane.b32.xlu0 %v480, 126
        %v486 = vpop.permute.xlu0 %485
        %v487 = vsel %vm292, %v484, %v486
        %490 = vst [vmem:[#allocation4 + $0x20] sm:$0xff] %v487
        %491 = vst.msk [vmem:[#allocation4 + $0x28] sm:$0xff] %vm292, %v486
        %v492 = vld [vmem:[#allocation3] sm:$0xff]
        %v493 = vld [vmem:[#allocation3 + $0x8] sm:$0xff]
        %496 = vrot.lane.b32.xlu0 %v492, 112
        %v497 = vpop.permute.xlu0 %496
        %498 = vrot.lane.b32.xlu0 %v493, 112
        %v499 = vpop.permute.xlu0 %498
        %v500 = vsel %vm306, %v497, %v499
        %503 = vst [vmem:[#allocation4 + $0x30] sm:$0xff] %v500
        %504 = vst.msk [vmem:[#allocation4 + $0x38] sm:$0xff] %vm306, %v499
        %v505 = vld [vmem:[#allocation3] sm:$0xff]
        %v506 = vld [vmem:[#allocation3 + $0x8] sm:$0xff]
        %509 = vrot.lane.b32.xlu0 %v505, 111
        %v510 = vpop.permute.xlu0 %509
        %511 = vrot.lane.b32.xlu0 %v506, 111
        %v512 = vpop.permute.xlu0 %511
        %v513 = vsel %vm320, %v510, %v512
        %516 = vst [vmem:[#allocation4 + $0x40] sm:$0xff] %v513
        %517 = vst.msk [vmem:[#allocation4 + $0x48] sm:$0xff] %vm320, %v512
        %v518 = vld [vmem:[#allocation3] sm:$0xff]
        %v519 = vld [vmem:[#allocation3 + $0x8] sm:$0xff]
        %522 = vrot.lane.b32.xlu0 %v518, 110
        %v523 = vpop.permute.xlu0 %522
        %524 = vrot.lane.b32.xlu0 %v519, 110
        %v525 = vpop.permute.xlu0 %524
        %v526 = vsel %vm334, %v523, %v525
        %529 = vst [vmem:[#allocation4 + $0x50] sm:$0xff] %v526
        %530 = vst.msk [vmem:[#allocation4 + $0x58] sm:$0xff] %vm334, %v525
        %v531 = vld [vmem:[#allocation3] sm:$0xff]
        %v532 = vld [vmem:[#allocation3 + $0x8] sm:$0xff]
        %535 = vrot.lane.b32.xlu0 %v531, 96
        %v536 = vpop.permute.xlu0 %535
        %537 = vrot.lane.b32.xlu0 %v532, 96
        %v538 = vpop.permute.xlu0 %537
        %v539 = vsel %vm348, %v536, %v538
        %542 = vst [vmem:[#allocation4 + $0x60] sm:$0xff] %v539
        %543 = vst.msk [vmem:[#allocation4 + $0x68] sm:$0xff] %vm348, %v538
        %v544 = vld [vmem:[#allocation3] sm:$0xff]
        %v545 = vld [vmem:[#allocation3 + $0x8] sm:$0xff]
        %548 = vrot.lane.b32.xlu0 %v544, 95
        %v549 = vpop.permute.xlu0 %548
        %550 = vrot.lane.b32.xlu0 %v545, 95
        %v551 = vpop.permute.xlu0 %550
        %v552 = vsel %vm362, %v549, %v551
        %555 = vst [vmem:[#allocation4 + $0x70] sm:$0xff] %v552
        %556 = vst.msk [vmem:[#allocation4 + $0x78] sm:$0xff] %vm362, %v551
        %v557 = vld [vmem:[#allocation3] sm:$0xff]
        %v558 = vld [vmem:[#allocation3 + $0x8] sm:$0xff]
        %561 = vrot.lane.b32.xlu0 %v557, 94
        %v562 = vpop.permute.xlu0 %561
        %563 = vrot.lane.b32.xlu0 %v558, 94
        %v564 = vpop.permute.xlu0 %563
        %v565 = vsel %vm376, %v562, %v564
        %568 = vst [vmem:[#allocation4 + $0x80] sm:$0xff] %v565
        %569 = vst.msk [vmem:[#allocation4 + $0x88] sm:$0xff] %vm376, %v564
        %v570 = vld [vmem:[%s3] sm:$0xf]
        %v571 = vld [vmem:[#allocation4] sm:$0xff]
        %v572 = vld [vmem:[#allocation4 + $0x8] sm:$0xff]
        %v573 = vld [vmem:[#allocation4 + $0x10] sm:$0xff]
        %v574 = vld [vmem:[#allocation4 + $0x18] sm:$0xff]
        %v575 = vld [vmem:[#allocation4 + $0x20] sm:$0xff]
        %v576 = vld [vmem:[#allocation4 + $0x28] sm:$0xff]
        %v577 = vld [vmem:[#allocation4 + $0x30] sm:$0xff]
        %v578 = vld [vmem:[#allocation4 + $0x38] sm:$0xff]
        %v579 = vld [vmem:[#allocation4 + $0x40] sm:$0xff]
        %v580 = vld [vmem:[#allocation4 + $0x48] sm:$0xff]
        %v581 = vld [vmem:[#allocation4 + $0x50] sm:$0xff]
        %v582 = vld [vmem:[#allocation4 + $0x58] sm:$0xff]
        %v583 = vld [vmem:[#allocation4 + $0x60] sm:$0xff]
        %v584 = vld [vmem:[#allocation4 + $0x68] sm:$0xff]
        %v585 = vld [vmem:[#allocation4 + $0x70] sm:$0xff]
        %v586 = vld [vmem:[#allocation4 + $0x78] sm:$0xff]
        %v587 = vld [vmem:[#allocation4 + $0x80] sm:$0xff]
        %v588 = vld [vmem:[#allocation4 + $0x88] sm:$0xff]
        %v589 = vpack.c.bf16 %v573, %v571
        %v590 = vpack.c.bf16 %v574, %v572
        %v591 = vpack.c.bf16 %v577, %v575
        %v592 = vpack.c.bf16 %v578, %v576
        %v593 = vpack.c.bf16 %v581, %v579
        %v594 = vpack.c.bf16 %v582, %v580
        %v595 = vpack.c.bf16 %v585, %v583
        %v596 = vpack.c.bf16 %v586, %v584
        %v597 = vpack.c.bf16 %v587, %v587
        %v598 = vpack.c.bf16 %v588, %v588
        %v599 = vld [vmem:[%s4] sm:$0xff]
        %601 = vset.pattern.permute.xlu0 0
        %602 = vperm.xlu0 %601, %v599
        %v603 = vpop.permute.xlu0 %602
        %vm605 = vcmask 588800
        %v607 = vsel %vm605, %v570, 0
        %vm609 = vcmask 1043456
        %v611 = vsel %vm609, %v597, 0
        %v614 = vsel %vm609, %v598, 0
        %616 = vmatprep.subr.bf16.mxu0 0
        %617 = vmatpush1.bf16.msra.mxu0 0
        %618 = vmatprep.subr.bf16.mxu0 0
        %619 = vmatpush1.bf16.msra.mxu0 0
        %620 = vmatprep.subr.bf16.mxu0 0
        %621 = vmatpush1.bf16.msra.mxu0 0
        %622 = vmatprep.subr.bf16.mxu0 %v614
        %623 = vmatpush1.bf16.msra.mxu0 %v611
        %624 = vmatprep.subr.bf16.mxu0 %v596
        %625 = vmatpush1.bf16.msra.mxu0 %v595
        %626 = vmatprep.subr.bf16.mxu0 %v594
        %627 = vmatpush1.bf16.msra.mxu0 %v593
        %628 = vmatprep.subr.bf16.mxu0 %v592
        %629 = vmatpush1.bf16.msra.mxu0 %v591
        %630 = vmatprep.subr.bf16.mxu0 %v590
        %631 = vmatpush1.bf16.msra.mxu0 %v589
        %632 = vmatprep.subr.bf16.mxu0 0
        %633 = vmatpush2.bf16.msra.mxu0 0
        %634 = vmatprep.subr.bf16.mxu0 0
        %635 = vmatpush2.bf16.msra.mxu0 0
        %636 = vmatprep.subr.bf16.mxu0 0
        %637 = vmatpush2.bf16.msra.mxu0 0
        %638 = vmatprep.subr.bf16.mxu0 0
        %639 = vmatpush2.bf16.msra.mxu0 0
        %640 = vmatprep.subr.bf16.mxu0 0
        %641 = vmatpush2.bf16.msra.mxu0 0
        %642 = vmatprep.subr.bf16.mxu0 0
        %643 = vmatpush2.bf16.msra.mxu0 0
        %644 = vmatprep.subr.bf16.mxu0 0
        %645 = vmatpush2.bf16.msra.mxu0 0
        %646 = vmatprep.subr.bf16.mxu0 0
        %647 = vmatpush2.bf16.msra.mxu0 0
        %648 = vmatprep.mubr.bf16.mxu0 0
        %649 = vmatmul.mubr.bf16.gmra.mxu0 %v607
        %v650 = vpop.f32.mrf.mxu0
        %v651 = vadd.f32 %v603, %v650
        %v652 = vpop.f32.mrf.mxu0
        %v653 = vadd.f32 %v603, %v652
        %v654 = vpop.f32.mrf.mxu0
        %v655 = vpop.f32.mrf.mxu0
        %656 = vdwg.mxu0
        %657 = vst [vmem:[%s230] sm:$0xff] %v651
        %658 = vst [vmem:[%s230 + $0x8] sm:$0xff] %v653
        %s659 = sand.u32 %s138, 1
        %s660 = scalar_lea.sflag [#allocation7], %s659
        %s661 = sand.u32 %s138, 1
        %s662 = smul.addr %s661, 16
        %s663 = scalar_lea.vmem [#allocation8], %s662
        // Predicated region
        $region45: #{tpu_custom_call.1} parent=39 // pred_check
          %p664 = pneg %p148
        $region46: #{tpu_custom_call.1} parent=39 // pred_check_branch
          %666 = sbr.rel (%p664) target = $region48
        $region47: #{tpu_custom_call.1} parent=39 // pred_region
          %s668 = ssub.s32 256, 256
          %669 = vsyncadd %s660, %s668
          %s670 = smul.addr %s20, 2
          %s671 = smul.addr %s670, 128
          %s672 = scalar_lea.hbm %s5, %s671
          %s674 = sshll.u32 %s663, 4
          %s675 = int_to_ptr.vmem [resolvable:$true] %s674
          %677 = dma.vmem_to_hbm [thread:$0]  %s675, 256, %s672, %s660
        $region48: #{tpu_custom_call.1} parent=39 // pred_fallthru
          _
      $region40: #{tpu_custom_call.1} parent=5 // pred_fallthru
        _
      %p678 = scmp.le.s32.totalorder 2, %s15
      // Predicated region
      $region49: #{tpu_custom_call.1} parent=5 // pred_check
        %p679 = pneg %p678
      $region50: #{tpu_custom_call.1} parent=5 // pred_check_branch
        %681 = sbr.rel (%p679) target = $region52
      $region51: #{tpu_custom_call.1} parent=5 // pred_region
        %s682 = ssub.s32 %s15, 2
        // Predicated region
        $region53: #{tpu_custom_call.1} parent=51 // pred_check
          %p683 = pneg %p154
        $region54: #{tpu_custom_call.1} parent=51 // pred_check_branch
          %685 = sbr.rel (%p683) target = $region56
        $region55: #{tpu_custom_call.1} parent=51 // pred_region
          %s686 = sand.u32 %s139, 1
          %s687 = scalar_lea.sflag [#allocation7], %s686
          %s688 = sand.u32 %s139, 1
          %s689 = smul.addr %s688, 16
          %s690 = scalar_lea.vmem [#allocation8], %s689
          %691 = dma.done %s687, 256
        $region56: #{tpu_custom_call.1} parent=51 // pred_fallthru
          _
      $region52: #{tpu_custom_call.1} parent=5 // pred_fallthru
        _
    $region6: #{tpu_custom_call.1} parent=1 // loop_footer
      %s19 = sadd.s32 1, %s15
    $region7: #{tpu_custom_call.1} parent=1 // loop_footer_branch
      %14 = sbr.rel target = $region3
    $region8: #{tpu_custom_call.1} parent=1 // loop_exit
      _
    %692 = vsyncpa [#allocation6], 1
    %s693 = scalar_lea.sflag [#allocation6], 1
    %694 = vsyncpa %s693, 1
    %695 = vsyncpa [#allocation7], 1
    %s696 = scalar_lea.sflag [#allocation7], 1
    %697 = vsyncpa %s696, 1

</llo_original>
